<compile_context>
chip_gen: v7x
topology: tpu7x:2x2x1
jax: 0.10.0
libtpu: 0.0.40
codegen_flags: <defaults>
</compile_context>

<pallas_src>
import jax
import jax.numpy as jnp
from jax.experimental import pallas as pl
from jax.experimental.pallas import tpu as pltpu


def _ridge_matmul_kernel(x_ref, b_ref, o_ref):
    """One (tm, N_pad) output tile; grid axis 1 (K) is the reduction axis.

    The output BlockSpec maps every k-step of the reduction to the same block,
    so `o_ref` stays resident in VMEM across K and doubles as the f32
    accumulator — no scratch buffer, no final copy/cast pass.
    """
    @pl.when(pl.program_id(1) == 0)
    def _():
        o_ref[...] = jnp.zeros_like(o_ref)

    o_ref[...] += jnp.dot(
        x_ref[...], b_ref[...], preferred_element_type=jnp.float32
    )


def _round_up(x: int, m: int) -> int:
    return pl.cdiv(x, m) * m


def ridge_forward(x: jax.Array, beta: jax.Array, *, tm: int = 512, tk: int = 512) -> jax.Array:
    """Computes x @ beta with a Pallas TPU kernel.

    x:    (B, K) float32   (K = num_inputs + 1, bias column already appended)
    beta: (K, C) float32
    returns (B, C) float32
    """
    B, K = x.shape
    Kb, C = beta.shape
    assert K == Kb, (K, Kb)
    x = x.astype(jnp.float32)
    beta = beta.astype(jnp.float32)

    # Output (lane) dim: pad to a multiple of 128 for lane-dense stores.
    N_pad = _round_up(C, 128)

    # K tile: 256-aligned (v6e/v7x MXU is 2x256^2; 128 also fine on v5e).
    # If the whole contraction fits a modest slab, use a single reduction step.
    k_single = _round_up(K, 256)
    if k_single <= 2048:
        tk = k_single
    else:
        tk = _round_up(tk, 256)
    K_pad = _round_up(K, tk)

    # M tile: 8-aligned, bounded so VMEM use is independent of batch size.
    m8 = _round_up(B, 8)
    if m8 <= tm:
        tm = m8
    else:
        tm = _round_up(tm, 8)
    M_pad = _round_up(B, tm)

    # Zero-padding the contraction dim / batch dim does not change the result;
    # padded rows/cols are sliced off below.
    x_p = jnp.pad(x, ((0, M_pad - B), (0, K_pad - K)))
    b_p = jnp.pad(beta, ((0, K_pad - K), (0, N_pad - C)))

    grid = (M_pad // tm, K_pad // tk)   # (parallel M tiles, arbitrary K reduction)

    cost = pl.CostEstimate(
        flops=2 * M_pad * K_pad * N_pad,
        transcendentals=0,
        bytes_accessed=4 * (M_pad * K_pad + K_pad * N_pad + M_pad * N_pad),
    )

    out = pl.pallas_call(
        _ridge_matmul_kernel,
        out_shape=jax.ShapeDtypeStruct((M_pad, N_pad), jnp.float32),
        grid_spec=pltpu.PrefetchScalarGridSpec(
            num_scalar_prefetch=0,
            grid=grid,
            in_specs=[
                pl.BlockSpec((tm, tk), lambda i, k: (i, k)),     # x tile
                pl.BlockSpec((tk, N_pad), lambda i, k: (k, 0)),  # beta slab
            ],
            out_specs=pl.BlockSpec((tm, N_pad), lambda i, k: (i, 0)),
        ),
        compiler_params=pltpu.CompilerParams(
            dimension_semantics=("parallel", "arbitrary"),
            vmem_limit_bytes=48 * 1024 * 1024,
        ),
        cost_estimate=cost,
    )(x_p, b_p)

    return out[:B, :C]


class RidgeRegressionJax:
    """JAX/Pallas port of the PyTorch RidgeRegression module (forward only)."""

    def __init__(self, num_inputs: int, num_classes: int):
        self.num_inputs = num_inputs
        self.num_classes = num_classes
        # Matches torch.ones(size=(num_inputs + 1, num_classes), dtype=float32)
        self.beta = jnp.ones((num_inputs + 1, num_classes), dtype=jnp.float32)
        # TODO(synk): training `step` / `evaluate` (MSE loss, grad clip, optimizer)
        # are host-side training utilities and are not part of this kernel.

    def forward(self, x: jax.Array) -> jax.Array:
        # x: (B, num_inputs + 1) — same contract as the PyTorch forward
        # (augmentation with the ones column happens in the caller, as in step()).
        return ridge_forward(x, self.beta)


if __name__ == "__main__":
    # Small shapes consistent with the module: images (B, C, H, W) flattened.
    B, C_in, H, W = 2, 4, 16, 16
    num_inputs = C_in * H * W          # 1024
    num_classes = 10

    key = jax.random.PRNGKey(0)
    x_img = jax.random.normal(key, (B, C_in, H, W), dtype=jnp.float32)

    # Glue (plain JAX), mirroring RidgeRegression.step(): flatten NCHW and
    # prepend the bias column of ones.
    x_flat = x_img.reshape(B, num_inputs)
    ones = jnp.ones((B, 1), dtype=jnp.float32)
    x_aug = jnp.concatenate([ones, x_flat], axis=-1)   # (B, num_inputs + 1)

    model = RidgeRegressionJax(num_inputs, num_classes)
    logits = model.forward(x_aug)
    jax.block_until_ready(logits)

    # Reference check against plain-JAX matmul.
    ref = x_aug @ model.beta
    assert logits.shape == (B, num_classes)
    assert jnp.allclose(logits, ref, atol=1e-4, rtol=1e-4)

    print("KERNEL_OK")
</pallas_src>

<mosaic_0001>
module attributes {stable_mosaic.version = 11 : i64} {
  func.func @_ridge_matmul_kernel(%arg0: i32, %arg1: i32, %arg2: memref<8x1280xf32, #tpu.memory_space<vmem>>, %arg3: memref<1280x128xf32, #tpu.memory_space<vmem>>, %arg4: memref<8x128xf32, #tpu.memory_space<vmem>>) attributes {dimension_semantics = [#tpu.dimension_semantics<parallel>, #tpu.dimension_semantics<arbitrary>], iteration_bounds = array<i64: 1, 1>, scalar_prefetch = 0 : i64, scratch_operands = 0 : i64, tpu.core_type = #tpu.core_type<tc>, window_params = [{transform_indices = @transform_0, window_bounds = array<i64: 8, 1280>}, {transform_indices = @transform_1, window_bounds = array<i64: 1280, 128>}, {transform_indices = @transform_2, window_bounds = array<i64: 8, 128>}]} {
    %c0_i32 = arith.constant 0 : i32
    %0 = arith.cmpi eq, %arg1, %c0_i32 : i32
    %1 = arith.extui %0 : i1 to i32
    %c0_i32_0 = arith.constant 0 : i32
    %2 = arith.cmpi ne, %1, %c0_i32_0 : i32
    scf.if %2 {
      %cst_8 = arith.constant 0.000000e+00 : f32
      %9 = vector.broadcast %cst_8 : f32 to vector<8x128xf32>
      %c0_9 = arith.constant 0 : index
      %c0_10 = arith.constant 0 : index
      %10 = vector.load %arg4[%c0_9, %c0_10] : memref<8x128xf32, #tpu.memory_space<vmem>>, vector<8x128xf32>
      tpu.vector_store %arg4[%c0_9, %c0_10], %9 {strides = array<i32>} : memref<8x128xf32, #tpu.memory_space<vmem>>, vector<8x128xf32>,
    } else {
    }
    %c0 = arith.constant 0 : index
    %c0_1 = arith.constant 0 : index
    %3 = vector.load %arg4[%c0, %c0_1] : memref<8x128xf32, #tpu.memory_space<vmem>>, vector<8x128xf32>
    %c0_2 = arith.constant 0 : index
    %c0_3 = arith.constant 0 : index
    %4 = vector.load %arg2[%c0_2, %c0_3] : memref<8x1280xf32, #tpu.memory_space<vmem>>, vector<8x1280xf32>
    %c0_4 = arith.constant 0 : index
    %c0_5 = arith.constant 0 : index
    %5 = vector.load %arg3[%c0_4, %c0_5] : memref<1280x128xf32, #tpu.memory_space<vmem>>, vector<1280x128xf32>
    %cst = arith.constant dense<0.000000e+00> : vector<8x128xf32>
    %6 = tpu.matmul %4, %5, %cst {dimension_numbers = #tpu.dot_dimension_numbers<[1], [0], [0], [1], [0, 0, 1, 1], [], []>} : vector<8x1280xf32>, vector<1280x128xf32>, vector<8x128xf32> -> vector<8x128xf32>
    %7 = arith.addf %3, %6 : vector<8x128xf32>
    %c0_6 = arith.constant 0 : index
    %c0_7 = arith.constant 0 : index
    %8 = vector.load %arg4[%c0_6, %c0_7] : memref<8x128xf32, #tpu.memory_space<vmem>>, vector<8x128xf32>
    tpu.vector_store %arg4[%c0_6, %c0_7], %7 {strides = array<i32>} : memref<8x128xf32, #tpu.memory_space<vmem>>, vector<8x128xf32>,
    return
  }
  func.func @transform_0(%arg0: i32, %arg1: i32) -> (i32, i32) {
    %c0_i32 = arith.constant 0 : i32
    return %arg0, %arg1 : i32, i32
  }
  func.func @transform_1(%arg0: i32, %arg1: i32) -> (i32, i32) {
    %c0_i32 = arith.constant 0 : i32
    %c0_i32_0 = arith.constant 0 : i32
    return %arg1, %c0_i32 : i32, i32
  }
  func.func @transform_2(%arg0: i32, %arg1: i32) -> (i32, i32) {
    %c0_i32 = arith.constant 0 : i32
    %c0_i32_0 = arith.constant 0 : i32
    return %arg0, %c0_i32 : i32, i32
  }
}

</mosaic_0001>

<llo_original>
// kernel: tpu_custom_call.1
$region0: #{tpu_custom_call.1}
  #allocation0 [shape = 'u32[]', space=smem, size = 0x4, offset = 0x4, fixed_abs, tag = 'smem constant byte address 0x4 - core index']
  #allocation1 [shape = 'u32[144,128]{1,0:T(1,128)}', space=vmem, size = 0x12000, scoped, tag = 'internal scratch']
  %s0 = inlined_call_operand.hbm [shape: f32[8,1280], index: 0, kind: input, shape index: {}]
  %s1 = inlined_call_operand.hbm [shape: f32[1280,128], index: 1, kind: input, shape index: {}]
  %s2 = inlined_call_operand.hbm [shape: f32[8,128], index: 2, kind: output, shape index: {}]
  %s3 = sld [smem:[#allocation0]]
  $region30: #{tpu_custom_call.1} parent=0
    _
  %s5 = ssub.s32 1, %s3
  %s6 = scalar_select 0, %s5, %s3
  $region1: #{tpu_custom_call.1} parent=0
    #allocation2 [shape = 'u8[40960]{0}', space=vmem, size = 0xa000, scoped, tag = 'input window, operand 0, single buffered']
    #allocation3 [shape = 's32[1]{0}', space=sflag, size = 0x4, scoped, tag = 'scoped memory for tpu_custom_call.1']
    #allocation4 [shape = 's32[1]{0}', space=sflag, size = 0x4, scoped, tag = 'scoped memory for tpu_custom_call.1']
    #allocation5 [shape = 'u8[655360]{0}', space=vmem, size = 0xa0000, scoped, tag = 'input window, operand 1, single buffered']
    #allocation6 [shape = 's32[1]{0}', space=sflag, size = 0x4, scoped, tag = 'scoped memory for tpu_custom_call.1']
    #allocation7 [shape = 'u8[4096]{0}', space=vmem, size = 0x1000, scoped, tag = 'output window, operand 0, single buffered']
    %7 = vsyncpa [#allocation3], 0
    %8 = vsyncpa [#allocation6], 0
    %9 = vsyncpa [#allocation4], 0
    // Predicated region
    $region2: #{tpu_custom_call.1} parent=1 // pred_check
      _
    $region3: #{tpu_custom_call.1} parent=1 // pred_check_branch
      %11 = sbr.rel (0) target = $region5
    $region4: #{tpu_custom_call.1} parent=1 // pred_region
      %s13 = ssub.s32 1280, 1280
      %14 = vsyncadd [#allocation3], %s13
      %s16 = sshll.u32 [#allocation2], 4
      %s17 = int_to_ptr.vmem [resolvable:$true] %s16
      %19 = dma.hbm_to_vmem [thread:$0]  %s0, 1280, %s17, [#allocation3]
    $region5: #{tpu_custom_call.1} parent=1 // pred_fallthru
      _
    // Predicated region
    $region6: #{tpu_custom_call.1} parent=1 // pred_check
      _
    $region7: #{tpu_custom_call.1} parent=1 // pred_check_branch
      %21 = sbr.rel (0) target = $region9
    $region8: #{tpu_custom_call.1} parent=1 // pred_region
      %s23 = ssub.s32 20480, 20480
      %24 = vsyncadd [#allocation6], %s23
      %s25 = sshll.u32 [#allocation5], 4
      %s26 = int_to_ptr.vmem [resolvable:$true] %s25
      %31 = dma.hbm_to_vmem [thread:$0]  %s1, 20480, %s26, [#allocation6], 128, 128, 8
    $region9: #{tpu_custom_call.1} parent=1 // pred_fallthru
      _
    // Predicated region
    $region10: #{tpu_custom_call.1} parent=1 // pred_check
      _
    $region11: #{tpu_custom_call.1} parent=1 // pred_check_branch
      %33 = sbr.rel (0) target = $region13
    $region12: #{tpu_custom_call.1} parent=1 // pred_region
      %34 = dma.done [#allocation3], 1280
    $region13: #{tpu_custom_call.1} parent=1 // pred_fallthru
      _
    // Predicated region
    $region14: #{tpu_custom_call.1} parent=1 // pred_check
      _
    $region15: #{tpu_custom_call.1} parent=1 // pred_check_branch
      %36 = sbr.rel (0) target = $region17
    $region16: #{tpu_custom_call.1} parent=1 // pred_region
      %37 = dma.done [#allocation6], 20480
    $region17: #{tpu_custom_call.1} parent=1 // pred_fallthru
      _
    %p38 = scmp.eq.s32.totalorder 0, 0
    // Predicated region
    $region18: #{tpu_custom_call.1} parent=1 // pred_check
      %p39 = pneg %p38
    $region19: #{tpu_custom_call.1} parent=1 // pred_check_branch
      %41 = sbr.rel (%p39) target = $region21
    $region20: #{tpu_custom_call.1} parent=1 // pred_region
      %42 = vst [vmem:[#allocation7] sm:$0xff] 0.0
    $region21: #{tpu_custom_call.1} parent=1 // pred_fallthru
      _
    %v43 = vld [vmem:[#allocation7] sm:$0xff]
    %v44 = vld [vmem:[#allocation2] sm:$0xff]
    %v45 = vld [vmem:[#allocation2 + $0x8] sm:$0xff]
    %v46 = vld [vmem:[#allocation2 + $0x10] sm:$0xff]
    %v47 = vld [vmem:[#allocation2 + $0x18] sm:$0xff]
    %v48 = vld [vmem:[#allocation2 + $0x20] sm:$0xff]
    %v49 = vld [vmem:[#allocation2 + $0x28] sm:$0xff]
    %v50 = vld [vmem:[#allocation2 + $0x30] sm:$0xff]
    %v51 = vld [vmem:[#allocation2 + $0x38] sm:$0xff]
    %v52 = vld [vmem:[#allocation2 + $0x40] sm:$0xff]
    %v53 = vld [vmem:[#allocation2 + $0x48] sm:$0xff]
    %v54 = vld [vmem:[#allocation5] sm:$0xff]
    %v55 = vld [vmem:[#allocation5 + $0x8] sm:$0xff]
    %v56 = vld [vmem:[#allocation5 + $0x10] sm:$0xff]
    %v57 = vld [vmem:[#allocation5 + $0x18] sm:$0xff]
    %v58 = vld [vmem:[#allocation5 + $0x20] sm:$0xff]
    %v59 = vld [vmem:[#allocation5 + $0x28] sm:$0xff]
    %v60 = vld [vmem:[#allocation5 + $0x30] sm:$0xff]
    %v61 = vld [vmem:[#allocation5 + $0x38] sm:$0xff]
    %v62 = vld [vmem:[#allocation5 + $0x40] sm:$0xff]
    %v63 = vld [vmem:[#allocation5 + $0x48] sm:$0xff]
    %v64 = vld [vmem:[#allocation5 + $0x50] sm:$0xff]
    %v65 = vld [vmem:[#allocation5 + $0x58] sm:$0xff]
    %v66 = vld [vmem:[#allocation5 + $0x60] sm:$0xff]
    %v67 = vld [vmem:[#allocation5 + $0x68] sm:$0xff]
    %v68 = vld [vmem:[#allocation5 + $0x70] sm:$0xff]
    %v69 = vld [vmem:[#allocation5 + $0x78] sm:$0xff]
    %v70 = vld [vmem:[#allocation5 + $0x80] sm:$0xff]
    %v71 = vld [vmem:[#allocation5 + $0x88] sm:$0xff]
    %v72 = vld [vmem:[#allocation5 + $0x90] sm:$0xff]
    %v73 = vld [vmem:[#allocation5 + $0x98] sm:$0xff]
    %v74 = vld [vmem:[#allocation5 + $0xa0] sm:$0xff]
    %v75 = vld [vmem:[#allocation5 + $0xa8] sm:$0xff]
    %v76 = vld [vmem:[#allocation5 + $0xb0] sm:$0xff]
    %v77 = vld [vmem:[#allocation5 + $0xb8] sm:$0xff]
    %v78 = vld [vmem:[#allocation5 + $0xc0] sm:$0xff]
    %v79 = vld [vmem:[#allocation5 + $0xc8] sm:$0xff]
    %v80 = vld [vmem:[#allocation5 + $0xd0] sm:$0xff]
    %v81 = vld [vmem:[#allocation5 + $0xd8] sm:$0xff]
    %v82 = vld [vmem:[#allocation5 + $0xe0] sm:$0xff]
    %v83 = vld [vmem:[#allocation5 + $0xe8] sm:$0xff]
    %v84 = vld [vmem:[#allocation5 + $0xf0] sm:$0xff]
    %v85 = vld [vmem:[#allocation5 + $0xf8] sm:$0xff]
    %v86 = vld [vmem:[#allocation5 + $0x100] sm:$0xff]
    %v87 = vld [vmem:[#allocation5 + $0x108] sm:$0xff]
    %v88 = vld [vmem:[#allocation5 + $0x110] sm:$0xff]
    %v89 = vld [vmem:[#allocation5 + $0x118] sm:$0xff]
    %v90 = vld [vmem:[#allocation5 + $0x120] sm:$0xff]
    %v91 = vld [vmem:[#allocation5 + $0x128] sm:$0xff]
    %v92 = vld [vmem:[#allocation5 + $0x130] sm:$0xff]
    %v93 = vld [vmem:[#allocation5 + $0x138] sm:$0xff]
    %v94 = vld [vmem:[#allocation5 + $0x140] sm:$0xff]
    %v95 = vld [vmem:[#allocation5 + $0x148] sm:$0xff]
    %v96 = vld [vmem:[#allocation5 + $0x150] sm:$0xff]
    %v97 = vld [vmem:[#allocation5 + $0x158] sm:$0xff]
    %v98 = vld [vmem:[#allocation5 + $0x160] sm:$0xff]
    %v99 = vld [vmem:[#allocation5 + $0x168] sm:$0xff]
    %v100 = vld [vmem:[#allocation5 + $0x170] sm:$0xff]
    %v101 = vld [vmem:[#allocation5 + $0x178] sm:$0xff]
    %v102 = vld [vmem:[#allocation5 + $0x180] sm:$0xff]
    %v103 = vld [vmem:[#allocation5 + $0x188] sm:$0xff]
    %v104 = vld [vmem:[#allocation5 + $0x190] sm:$0xff]
    %v105 = vld [vmem:[#allocation5 + $0x198] sm:$0xff]
    %v106 = vld [vmem:[#allocation5 + $0x1a0] sm:$0xff]
    %v107 = vld [vmem:[#allocation5 + $0x1a8] sm:$0xff]
    %v108 = vld [vmem:[#allocation5 + $0x1b0] sm:$0xff]
    %v109 = vld [vmem:[#allocation5 + $0x1b8] sm:$0xff]
    %v110 = vld [vmem:[#allocation5 + $0x1c0] sm:$0xff]
    %v111 = vld [vmem:[#allocation5 + $0x1c8] sm:$0xff]
    %v112 = vld [vmem:[#allocation5 + $0x1d0] sm:$0xff]
    %v113 = vld [vmem:[#allocation5 + $0x1d8] sm:$0xff]
    %v114 = vld [vmem:[#allocation5 + $0x1e0] sm:$0xff]
    %v115 = vld [vmem:[#allocation5 + $0x1e8] sm:$0xff]
    %v116 = vld [vmem:[#allocation5 + $0x1f0] sm:$0xff]
    %v117 = vld [vmem:[#allocation5 + $0x1f8] sm:$0xff]
    %v118 = vld [vmem:[#allocation5 + $0x200] sm:$0xff]
    %v119 = vld [vmem:[#allocation5 + $0x208] sm:$0xff]
    %v120 = vld [vmem:[#allocation5 + $0x210] sm:$0xff]
    %v121 = vld [vmem:[#allocation5 + $0x218] sm:$0xff]
    %v122 = vld [vmem:[#allocation5 + $0x220] sm:$0xff]
    %v123 = vld [vmem:[#allocation5 + $0x228] sm:$0xff]
    %v124 = vld [vmem:[#allocation5 + $0x230] sm:$0xff]
    %v125 = vld [vmem:[#allocation5 + $0x238] sm:$0xff]
    %v126 = vld [vmem:[#allocation5 + $0x240] sm:$0xff]
    %v127 = vld [vmem:[#allocation5 + $0x248] sm:$0xff]
    %v128 = vld [vmem:[#allocation5 + $0x250] sm:$0xff]
    %v129 = vld [vmem:[#allocation5 + $0x258] sm:$0xff]
    %v130 = vld [vmem:[#allocation5 + $0x260] sm:$0xff]
    %v131 = vld [vmem:[#allocation5 + $0x268] sm:$0xff]
    %v132 = vld [vmem:[#allocation5 + $0x270] sm:$0xff]
    %v133 = vld [vmem:[#allocation5 + $0x278] sm:$0xff]
    %v134 = vld [vmem:[#allocation5 + $0x280] sm:$0xff]
    %v135 = vld [vmem:[#allocation5 + $0x288] sm:$0xff]
    %v136 = vld [vmem:[#allocation5 + $0x290] sm:$0xff]
    %v137 = vld [vmem:[#allocation5 + $0x298] sm:$0xff]
    %v138 = vld [vmem:[#allocation5 + $0x2a0] sm:$0xff]
    %v139 = vld [vmem:[#allocation5 + $0x2a8] sm:$0xff]
    %v140 = vld [vmem:[#allocation5 + $0x2b0] sm:$0xff]
    %v141 = vld [vmem:[#allocation5 + $0x2b8] sm:$0xff]
    %v142 = vld [vmem:[#allocation5 + $0x2c0] sm:$0xff]
    %v143 = vld [vmem:[#allocation5 + $0x2c8] sm:$0xff]
    %v144 = vld [vmem:[#allocation5 + $0x2d0] sm:$0xff]
    %v145 = vld [vmem:[#allocation5 + $0x2d8] sm:$0xff]
    %v146 = vld [vmem:[#allocation5 + $0x2e0] sm:$0xff]
    %v147 = vld [vmem:[#allocation5 + $0x2e8] sm:$0xff]
    %v148 = vld [vmem:[#allocation5 + $0x2f0] sm:$0xff]
    %v149 = vld [vmem:[#allocation5 + $0x2f8] sm:$0xff]
    %v150 = vld [vmem:[#allocation5 + $0x300] sm:$0xff]
    %v151 = vld [vmem:[#allocation5 + $0x308] sm:$0xff]
    %v152 = vld [vmem:[#allocation5 + $0x310] sm:$0xff]
    %v153 = vld [vmem:[#allocation5 + $0x318] sm:$0xff]
    %v154 = vld [vmem:[#allocation5 + $0x320] sm:$0xff]
    %v155 = vld [vmem:[#allocation5 + $0x328] sm:$0xff]
    %v156 = vld [vmem:[#allocation5 + $0x330] sm:$0xff]
    %v157 = vld [vmem:[#allocation5 + $0x338] sm:$0xff]
    %v158 = vld [vmem:[#allocation5 + $0x340] sm:$0xff]
    %v159 = vld [vmem:[#allocation5 + $0x348] sm:$0xff]
    %v160 = vld [vmem:[#allocation5 + $0x350] sm:$0xff]
    %v161 = vld [vmem:[#allocation5 + $0x358] sm:$0xff]
    %v162 = vld [vmem:[#allocation5 + $0x360] sm:$0xff]
    %v163 = vld [vmem:[#allocation5 + $0x368] sm:$0xff]
    %v164 = vld [vmem:[#allocation5 + $0x370] sm:$0xff]
    %v165 = vld [vmem:[#allocation5 + $0x378] sm:$0xff]
    %v166 = vld [vmem:[#allocation5 + $0x380] sm:$0xff]
    %v167 = vld [vmem:[#allocation5 + $0x388] sm:$0xff]
    %v168 = vld [vmem:[#allocation5 + $0x390] sm:$0xff]
    %v169 = vld [vmem:[#allocation5 + $0x398] sm:$0xff]
    %v170 = vld [vmem:[#allocation5 + $0x3a0] sm:$0xff]
    %v171 = vld [vmem:[#allocation5 + $0x3a8] sm:$0xff]
    %v172 = vld [vmem:[#allocation5 + $0x3b0] sm:$0xff]
    %v173 = vld [vmem:[#allocation5 + $0x3b8] sm:$0xff]
    %v174 = vld [vmem:[#allocation5 + $0x3c0] sm:$0xff]
    %v175 = vld [vmem:[#allocation5 + $0x3c8] sm:$0xff]
    %v176 = vld [vmem:[#allocation5 + $0x3d0] sm:$0xff]
    %v177 = vld [vmem:[#allocation5 + $0x3d8] sm:$0xff]
    %v178 = vld [vmem:[#allocation5 + $0x3e0] sm:$0xff]
    %v179 = vld [vmem:[#allocation5 + $0x3e8] sm:$0xff]
    %v180 = vld [vmem:[#allocation5 + $0x3f0] sm:$0xff]
    %v181 = vld [vmem:[#allocation5 + $0x3f8] sm:$0xff]
    %v182 = vld [vmem:[#allocation5 + $0x400] sm:$0xff]
    %v183 = vld [vmem:[#allocation5 + $0x408] sm:$0xff]
    %v184 = vld [vmem:[#allocation5 + $0x410] sm:$0xff]
    %v185 = vld [vmem:[#allocation5 + $0x418] sm:$0xff]
    %v186 = vld [vmem:[#allocation5 + $0x420] sm:$0xff]
    %v187 = vld [vmem:[#allocation5 + $0x428] sm:$0xff]
    %v188 = vld [vmem:[#allocation5 + $0x430] sm:$0xff]
    %v189 = vld [vmem:[#allocation5 + $0x438] sm:$0xff]
    %v190 = vld [vmem:[#allocation5 + $0x440] sm:$0xff]
    %v191 = vld [vmem:[#allocation5 + $0x448] sm:$0xff]
    %v192 = vld [vmem:[#allocation5 + $0x450] sm:$0xff]
    %v193 = vld [vmem:[#allocation5 + $0x458] sm:$0xff]
    %v194 = vld [vmem:[#allocation5 + $0x460] sm:$0xff]
    %v195 = vld [vmem:[#allocation5 + $0x468] sm:$0xff]
    %v196 = vld [vmem:[#allocation5 + $0x470] sm:$0xff]
    %v197 = vld [vmem:[#allocation5 + $0x478] sm:$0xff]
    %v198 = vld [vmem:[#allocation5 + $0x480] sm:$0xff]
    %v199 = vld [vmem:[#allocation5 + $0x488] sm:$0xff]
    %v200 = vld [vmem:[#allocation5 + $0x490] sm:$0xff]
    %v201 = vld [vmem:[#allocation5 + $0x498] sm:$0xff]
    %v202 = vld [vmem:[#allocation5 + $0x4a0] sm:$0xff]
    %v203 = vld [vmem:[#allocation5 + $0x4a8] sm:$0xff]
    %v204 = vld [vmem:[#allocation5 + $0x4b0] sm:$0xff]
    %v205 = vld [vmem:[#allocation5 + $0x4b8] sm:$0xff]
    %v206 = vld [vmem:[#allocation5 + $0x4c0] sm:$0xff]
    %v207 = vld [vmem:[#allocation5 + $0x4c8] sm:$0xff]
    %v208 = vld [vmem:[#allocation5 + $0x4d0] sm:$0xff]
    %v209 = vld [vmem:[#allocation5 + $0x4d8] sm:$0xff]
    %v210 = vld [vmem:[#allocation5 + $0x4e0] sm:$0xff]
    %v211 = vld [vmem:[#allocation5 + $0x4e8] sm:$0xff]
    %v212 = vld [vmem:[#allocation5 + $0x4f0] sm:$0xff]
    %v213 = vld [vmem:[#allocation5 + $0x4f8] sm:$0xff]
    %214 = vmatprep.subr.mxu0 0.0
    %215 = vmatpush1.msra.mxu0 %v54
    %216 = vmatprep.subr.mxu0 0.0
    %217 = vmatpush1.msra.mxu0 %v55
    %218 = vmatprep.subr.mxu0 0.0
    %219 = vmatpush1.msra.mxu0 %v56
    %220 = vmatprep.subr.mxu0 0.0
    %221 = vmatpush1.msra.mxu0 %v57
    %222 = vmatprep.subr.mxu0 0.0
    %223 = vmatpush1.msra.mxu0 %v58
    %224 = vmatprep.subr.mxu0 0.0
    %225 = vmatpush1.msra.mxu0 %v59
    %226 = vmatprep.subr.mxu0 0.0
    %227 = vmatpush1.msra.mxu0 %v60
    %228 = vmatprep.subr.mxu0 0.0
    %229 = vmatpush1.msra.mxu0 %v61
    %230 = vmatprep.subr.mxu0 0.0
    %231 = vmatpush1.msra.mxu0 %v62
    %232 = vmatprep.subr.mxu0 0.0
    %233 = vmatpush1.msra.mxu0 %v63
    %234 = vmatprep.subr.mxu0 0.0
    %235 = vmatpush1.msra.mxu0 %v64
    %236 = vmatprep.subr.mxu0 0.0
    %237 = vmatpush1.msra.mxu0 %v65
    %238 = vmatprep.subr.mxu0 0.0
    %239 = vmatpush1.msra.mxu0 %v66
    %240 = vmatprep.subr.mxu0 0.0
    %241 = vmatpush1.msra.mxu0 %v67
    %242 = vmatprep.subr.mxu0 0.0
    %243 = vmatpush1.msra.mxu0 %v68
    %244 = vmatprep.subr.mxu0 0.0
    %245 = vmatpush1.msra.mxu0 %v69
    %246 = vmatprep.subr.mxu0 0.0
    %247 = vmatpush1.msra.mxu0 %v70
    %248 = vmatprep.subr.mxu0 0.0
    %249 = vmatpush1.msra.mxu0 %v71
    %250 = vmatprep.subr.mxu0 0.0
    %251 = vmatpush1.msra.mxu0 %v72
    %252 = vmatprep.subr.mxu0 0.0
    %253 = vmatpush1.msra.mxu0 %v73
    %254 = vmatprep.subr.mxu0 0.0
    %255 = vmatpush1.msra.mxu0 %v74
    %256 = vmatprep.subr.mxu0 0.0
    %257 = vmatpush1.msra.mxu0 %v75
    %258 = vmatprep.subr.mxu0 0.0
    %259 = vmatpush1.msra.mxu0 %v76
    %260 = vmatprep.subr.mxu0 0.0
    %261 = vmatpush1.msra.mxu0 %v77
    %262 = vmatprep.subr.mxu0 0.0
    %263 = vmatpush1.msra.mxu0 %v78
    %264 = vmatprep.subr.mxu0 0.0
    %265 = vmatpush1.msra.mxu0 %v79
    %266 = vmatprep.subr.mxu0 0.0
    %267 = vmatpush1.msra.mxu0 %v80
    %268 = vmatprep.subr.mxu0 0.0
    %269 = vmatpush1.msra.mxu0 %v81
    %270 = vmatprep.subr.mxu0 0.0
    %271 = vmatpush1.msra.mxu0 %v82
    %272 = vmatprep.subr.mxu0 0.0
    %273 = vmatpush1.msra.mxu0 %v83
    %274 = vmatprep.subr.mxu0 0.0
    %275 = vmatpush1.msra.mxu0 %v84
    %276 = vmatprep.subr.mxu0 0.0
    %277 = vmatpush1.msra.mxu0 %v85
    %278 = vmatprep.mubr.f32.mxu0 %v45
    %279 = vmatmul.mubr.f32.gmra.mrb[0].mxu0 %v44
    %v280 = vpop.f32.mrb[0].mxu0
    %v281 = vadd.f32 0.0, %v280
    %v282 = vpop.f32.mrb[0].mxu0
    %283 = vdwg.mxu0
    %284 = vmatprep.subr.mxu0 0.0
    %285 = vmatpush1.msra.mxu0 %v86
    %286 = vmatprep.subr.mxu0 0.0
    %287 = vmatpush1.msra.mxu0 %v87
    %288 = vmatprep.subr.mxu0 0.0
    %289 = vmatpush1.msra.mxu0 %v88
    %290 = vmatprep.subr.mxu0 0.0
    %291 = vmatpush1.msra.mxu0 %v89
    %292 = vmatprep.subr.mxu0 0.0
    %293 = vmatpush1.msra.mxu0 %v90
    %294 = vmatprep.subr.mxu0 0.0
    %295 = vmatpush1.msra.mxu0 %v91
    %296 = vmatprep.subr.mxu0 0.0
    %297 = vmatpush1.msra.mxu0 %v92
    %298 = vmatprep.subr.mxu0 0.0
    %299 = vmatpush1.msra.mxu0 %v93
    %300 = vmatprep.subr.mxu0 0.0
    %301 = vmatpush1.msra.mxu0 %v94
    %302 = vmatprep.subr.mxu0 0.0
    %303 = vmatpush1.msra.mxu0 %v95
    %304 = vmatprep.subr.mxu0 0.0
    %305 = vmatpush1.msra.mxu0 %v96
    %306 = vmatprep.subr.mxu0 0.0
    %307 = vmatpush1.msra.mxu0 %v97
    %308 = vmatprep.subr.mxu0 0.0
    %309 = vmatpush1.msra.mxu0 %v98
    %310 = vmatprep.subr.mxu0 0.0
    %311 = vmatpush1.msra.mxu0 %v99
    %312 = vmatprep.subr.mxu0 0.0
    %313 = vmatpush1.msra.mxu0 %v100
    %314 = vmatprep.subr.mxu0 0.0
    %315 = vmatpush1.msra.mxu0 %v101
    %316 = vmatprep.subr.mxu0 0.0
    %317 = vmatpush1.msra.mxu0 %v102
    %318 = vmatprep.subr.mxu0 0.0
    %319 = vmatpush1.msra.mxu0 %v103
    %320 = vmatprep.subr.mxu0 0.0
    %321 = vmatpush1.msra.mxu0 %v104
    %322 = vmatprep.subr.mxu0 0.0
    %323 = vmatpush1.msra.mxu0 %v105
    %324 = vmatprep.subr.mxu0 0.0
    %325 = vmatpush1.msra.mxu0 %v106
    %326 = vmatprep.subr.mxu0 0.0
    %327 = vmatpush1.msra.mxu0 %v107
    %328 = vmatprep.subr.mxu0 0.0
    %329 = vmatpush1.msra.mxu0 %v108
    %330 = vmatprep.subr.mxu0 0.0
    %331 = vmatpush1.msra.mxu0 %v109
    %332 = vmatprep.subr.mxu0 0.0
    %333 = vmatpush1.msra.mxu0 %v110
    %334 = vmatprep.subr.mxu0 0.0
    %335 = vmatpush1.msra.mxu0 %v111
    %336 = vmatprep.subr.mxu0 0.0
    %337 = vmatpush1.msra.mxu0 %v112
    %338 = vmatprep.subr.mxu0 0.0
    %339 = vmatpush1.msra.mxu0 %v113
    %340 = vmatprep.subr.mxu0 0.0
    %341 = vmatpush1.msra.mxu0 %v114
    %342 = vmatprep.subr.mxu0 0.0
    %343 = vmatpush1.msra.mxu0 %v115
    %344 = vmatprep.subr.mxu0 0.0
    %345 = vmatpush1.msra.mxu0 %v116
    %346 = vmatprep.subr.mxu0 0.0
    %347 = vmatpush1.msra.mxu0 %v117
    %348 = vmatprep.mubr.f32.mxu0 %v47
    %349 = vmatmul.mubr.f32.gmra.mrb[0].mxu0 %v46
    %v350 = vpop.f32.mrb[0].mxu0
    %v351 = vadd.f32 %v281, %v350
    %v352 = vpop.f32.mrb[0].mxu0
    %353 = vdwg.mxu0
    %354 = vmatprep.subr.mxu0 0.0
    %355 = vmatpush1.msra.mxu0 %v118
    %356 = vmatprep.subr.mxu0 0.0
    %357 = vmatpush1.msra.mxu0 %v119
    %358 = vmatprep.subr.mxu0 0.0
    %359 = vmatpush1.msra.mxu0 %v120
    %360 = vmatprep.subr.mxu0 0.0
    %361 = vmatpush1.msra.mxu0 %v121
    %362 = vmatprep.subr.mxu0 0.0
    %363 = vmatpush1.msra.mxu0 %v122
    %364 = vmatprep.subr.mxu0 0.0
    %365 = vmatpush1.msra.mxu0 %v123
    %366 = vmatprep.subr.mxu0 0.0
    %367 = vmatpush1.msra.mxu0 %v124
    %368 = vmatprep.subr.mxu0 0.0
    %369 = vmatpush1.msra.mxu0 %v125
    %370 = vmatprep.subr.mxu0 0.0
    %371 = vmatpush1.msra.mxu0 %v126
    %372 = vmatprep.subr.mxu0 0.0
    %373 = vmatpush1.msra.mxu0 %v127
    %374 = vmatprep.subr.mxu0 0.0
    %375 = vmatpush1.msra.mxu0 %v128
    %376 = vmatprep.subr.mxu0 0.0
    %377 = vmatpush1.msra.mxu0 %v129
    %378 = vmatprep.subr.mxu0 0.0
    %379 = vmatpush1.msra.mxu0 %v130
    %380 = vmatprep.subr.mxu0 0.0
    %381 = vmatpush1.msra.mxu0 %v131
    %382 = vmatprep.subr.mxu0 0.0
    %383 = vmatpush1.msra.mxu0 %v132
    %384 = vmatprep.subr.mxu0 0.0
    %385 = vmatpush1.msra.mxu0 %v133
    %386 = vmatprep.subr.mxu0 0.0
    %387 = vmatpush1.msra.mxu0 %v134
    %388 = vmatprep.subr.mxu0 0.0
    %389 = vmatpush1.msra.mxu0 %v135
    %390 = vmatprep.subr.mxu0 0.0
    %391 = vmatpush1.msra.mxu0 %v136
    %392 = vmatprep.subr.mxu0 0.0
    %393 = vmatpush1.msra.mxu0 %v137
    %394 = vmatprep.subr.mxu0 0.0
    %395 = vmatpush1.msra.mxu0 %v138
    %396 = vmatprep.subr.mxu0 0.0
    %397 = vmatpush1.msra.mxu0 %v139
    %398 = vmatprep.subr.mxu0 0.0
    %399 = vmatpush1.msra.mxu0 %v140
    %400 = vmatprep.subr.mxu0 0.0
    %401 = vmatpush1.msra.mxu0 %v141
    %402 = vmatprep.subr.mxu0 0.0
    %403 = vmatpush1.msra.mxu0 %v142
    %404 = vmatprep.subr.mxu0 0.0
    %405 = vmatpush1.msra.mxu0 %v143
    %406 = vmatprep.subr.mxu0 0.0
    %407 = vmatpush1.msra.mxu0 %v144
    %408 = vmatprep.subr.mxu0 0.0
    %409 = vmatpush1.msra.mxu0 %v145
    %410 = vmatprep.subr.mxu0 0.0
    %411 = vmatpush1.msra.mxu0 %v146
    %412 = vmatprep.subr.mxu0 0.0
    %413 = vmatpush1.msra.mxu0 %v147
    %414 = vmatprep.subr.mxu0 0.0
    %415 = vmatpush1.msra.mxu0 %v148
    %416 = vmatprep.subr.mxu0 0.0
    %417 = vmatpush1.msra.mxu0 %v149
    %418 = vmatprep.mubr.f32.mxu0 %v49
    %419 = vmatmul.mubr.f32.gmra.mrb[0].mxu0 %v48
    %v420 = vpop.f32.mrb[0].mxu0
    %v421 = vadd.f32 %v351, %v420
    %v422 = vpop.f32.mrb[0].mxu0
    %423 = vdwg.mxu0
    %424 = vmatprep.subr.mxu0 0.0
    %425 = vmatpush1.msra.mxu0 %v150
    %426 = vmatprep.subr.mxu0 0.0
    %427 = vmatpush1.msra.mxu0 %v151
    %428 = vmatprep.subr.mxu0 0.0
    %429 = vmatpush1.msra.mxu0 %v152
    %430 = vmatprep.subr.mxu0 0.0
    %431 = vmatpush1.msra.mxu0 %v153
    %432 = vmatprep.subr.mxu0 0.0
    %433 = vmatpush1.msra.mxu0 %v154
    %434 = vmatprep.subr.mxu0 0.0
    %435 = vmatpush1.msra.mxu0 %v155
    %436 = vmatprep.subr.mxu0 0.0
    %437 = vmatpush1.msra.mxu0 %v156
    %438 = vmatprep.subr.mxu0 0.0
    %439 = vmatpush1.msra.mxu0 %v157
    %440 = vmatprep.subr.mxu0 0.0
    %441 = vmatpush1.msra.mxu0 %v158
    %442 = vmatprep.subr.mxu0 0.0
    %443 = vmatpush1.msra.mxu0 %v159
    %444 = vmatprep.subr.mxu0 0.0
    %445 = vmatpush1.msra.mxu0 %v160
    %446 = vmatprep.subr.mxu0 0.0
    %447 = vmatpush1.msra.mxu0 %v161
    %448 = vmatprep.subr.mxu0 0.0
    %449 = vmatpush1.msra.mxu0 %v162
    %450 = vmatprep.subr.mxu0 0.0
    %451 = vmatpush1.msra.mxu0 %v163
    %452 = vmatprep.subr.mxu0 0.0
    %453 = vmatpush1.msra.mxu0 %v164
    %454 = vmatprep.subr.mxu0 0.0
    %455 = vmatpush1.msra.mxu0 %v165
    %456 = vmatprep.subr.mxu0 0.0
    %457 = vmatpush1.msra.mxu0 %v166
    %458 = vmatprep.subr.mxu0 0.0
    %459 = vmatpush1.msra.mxu0 %v167
    %460 = vmatprep.subr.mxu0 0.0
    %461 = vmatpush1.msra.mxu0 %v168
    %462 = vmatprep.subr.mxu0 0.0
    %463 = vmatpush1.msra.mxu0 %v169
    %464 = vmatprep.subr.mxu0 0.0
    %465 = vmatpush1.msra.mxu0 %v170
    %466 = vmatprep.subr.mxu0 0.0
    %467 = vmatpush1.msra.mxu0 %v171
    %468 = vmatprep.subr.mxu0 0.0
    %469 = vmatpush1.msra.mxu0 %v172
    %470 = vmatprep.subr.mxu0 0.0
    %471 = vmatpush1.msra.mxu0 %v173
    %472 = vmatprep.subr.mxu0 0.0
    %473 = vmatpush1.msra.mxu0 %v174
    %474 = vmatprep.subr.mxu0 0.0
    %475 = vmatpush1.msra.mxu0 %v175
    %476 = vmatprep.subr.mxu0 0.0
    %477 = vmatpush1.msra.mxu0 %v176
    %478 = vmatprep.subr.mxu0 0.0
    %479 = vmatpush1.msra.mxu0 %v177
    %480 = vmatprep.subr.mxu0 0.0
    %481 = vmatpush1.msra.mxu0 %v178
    %482 = vmatprep.subr.mxu0 0.0
    %483 = vmatpush1.msra.mxu0 %v179
    %484 = vmatprep.subr.mxu0 0.0
    %485 = vmatpush1.msra.mxu0 %v180
    %486 = vmatprep.subr.mxu0 0.0
    %487 = vmatpush1.msra.mxu0 %v181
    %488 = vmatprep.mubr.f32.mxu0 %v51
    %489 = vmatmul.mubr.f32.gmra.mrb[0].mxu0 %v50
    %v490 = vpop.f32.mrb[0].mxu0
    %v491 = vadd.f32 %v421, %v490
    %v492 = vpop.f32.mrb[0].mxu0
    %493 = vdwg.mxu0
    %494 = vmatprep.subr.mxu0 0.0
    %495 = vmatpush1.msra.mxu0 %v182
    %496 = vmatprep.subr.mxu0 0.0
    %497 = vmatpush1.msra.mxu0 %v183
    %498 = vmatprep.subr.mxu0 0.0
    %499 = vmatpush1.msra.mxu0 %v184
    %500 = vmatprep.subr.mxu0 0.0
    %501 = vmatpush1.msra.mxu0 %v185
    %502 = vmatprep.subr.mxu0 0.0
    %503 = vmatpush1.msra.mxu0 %v186
    %504 = vmatprep.subr.mxu0 0.0
    %505 = vmatpush1.msra.mxu0 %v187
    %506 = vmatprep.subr.mxu0 0.0
    %507 = vmatpush1.msra.mxu0 %v188
    %508 = vmatprep.subr.mxu0 0.0
    %509 = vmatpush1.msra.mxu0 %v189
    %510 = vmatprep.subr.mxu0 0.0
    %511 = vmatpush1.msra.mxu0 %v190
    %512 = vmatprep.subr.mxu0 0.0
    %513 = vmatpush1.msra.mxu0 %v191
    %514 = vmatprep.subr.mxu0 0.0
    %515 = vmatpush1.msra.mxu0 %v192
    %516 = vmatprep.subr.mxu0 0.0
    %517 = vmatpush1.msra.mxu0 %v193
    %518 = vmatprep.subr.mxu0 0.0
    %519 = vmatpush1.msra.mxu0 %v194
    %520 = vmatprep.subr.mxu0 0.0
    %521 = vmatpush1.msra.mxu0 %v195
    %522 = vmatprep.subr.mxu0 0.0
    %523 = vmatpush1.msra.mxu0 %v196
    %524 = vmatprep.subr.mxu0 0.0
    %525 = vmatpush1.msra.mxu0 %v197
    %526 = vmatprep.subr.mxu0 0.0
    %527 = vmatpush1.msra.mxu0 %v198
    %528 = vmatprep.subr.mxu0 0.0
    %529 = vmatpush1.msra.mxu0 %v199
    %530 = vmatprep.subr.mxu0 0.0
    %531 = vmatpush1.msra.mxu0 %v200
    %532 = vmatprep.subr.mxu0 0.0
    %533 = vmatpush1.msra.mxu0 %v201
    %534 = vmatprep.subr.mxu0 0.0
    %535 = vmatpush1.msra.mxu0 %v202
    %536 = vmatprep.subr.mxu0 0.0
    %537 = vmatpush1.msra.mxu0 %v203
    %538 = vmatprep.subr.mxu0 0.0
    %539 = vmatpush1.msra.mxu0 %v204
    %540 = vmatprep.subr.mxu0 0.0
    %541 = vmatpush1.msra.mxu0 %v205
    %542 = vmatprep.subr.mxu0 0.0
    %543 = vmatpush1.msra.mxu0 %v206
    %544 = vmatprep.subr.mxu0 0.0
    %545 = vmatpush1.msra.mxu0 %v207
    %546 = vmatprep.subr.mxu0 0.0
    %547 = vmatpush1.msra.mxu0 %v208
    %548 = vmatprep.subr.mxu0 0.0
    %549 = vmatpush1.msra.mxu0 %v209
    %550 = vmatprep.subr.mxu0 0.0
    %551 = vmatpush1.msra.mxu0 %v210
    %552 = vmatprep.subr.mxu0 0.0
    %553 = vmatpush1.msra.mxu0 %v211
    %554 = vmatprep.subr.mxu0 0.0
    %555 = vmatpush1.msra.mxu0 %v212
    %556 = vmatprep.subr.mxu0 0.0
    %557 = vmatpush1.msra.mxu0 %v213
    %558 = vmatprep.mubr.f32.mxu0 %v53
    %559 = vmatmul.mubr.f32.gmra.mrb[0].mxu0 %v52
    %v560 = vpop.f32.mrb[0].mxu0
    %v561 = vadd.f32 %v491, %v560
    %v562 = vpop.f32.mrb[0].mxu0
    %563 = vdwg.mxu0
    %v564 = vadd.f32 %v43, %v561
    %565 = vst [vmem:[#allocation7] sm:$0xff] %v564
    // Predicated region
    $region22: #{tpu_custom_call.1} parent=1 // pred_check
      _
    $region23: #{tpu_custom_call.1} parent=1 // pred_check_branch
      %567 = sbr.rel (0) target = $region25
    $region24: #{tpu_custom_call.1} parent=1 // pred_region
      %s569 = ssub.s32 128, 128
      %570 = vsyncadd [#allocation4], %s569
      %s572 = sshll.u32 [#allocation7], 4
      %s573 = int_to_ptr.vmem [resolvable:$true] %s572
      %575 = dma.vmem_to_hbm [thread:$0]  %s573, 128, %s2, [#allocation4]
    $region25: #{tpu_custom_call.1} parent=1 // pred_fallthru
      _
    // Predicated region
    $region26: #{tpu_custom_call.1} parent=1 // pred_check
      _
    $region27: #{tpu_custom_call.1} parent=1 // pred_check_branch
      %577 = sbr.rel (0) target = $region29
    $region28: #{tpu_custom_call.1} parent=1 // pred_region
      %578 = dma.done [#allocation4], 128
    $region29: #{tpu_custom_call.1} parent=1 // pred_fallthru
      _
    %579 = vsyncpa [#allocation3], 1
    %580 = vsyncpa [#allocation6], 1
    %581 = vsyncpa [#allocation4], 1

</llo_original>
